<compile_context>
chip_gen: v5e
topology: v5e:2x2
jax: 0.10.0
libtpu: 0.0.40
codegen_flags: <defaults>
</compile_context>

<pallas_src>
import functools

import jax
import jax.numpy as jnp
from jax.experimental import pallas as pl
from jax.experimental.pallas import tpu as pltpu

_MiB = 1024 * 1024


# --------------------------------------------------------------------------
# Kernel
# --------------------------------------------------------------------------
def _attention_kernel(*refs, has_mask: bool):
    if has_mask:
        x_ref, w_ref, m_ref, ctx_ref, aw_ref = refs
    else:
        x_ref, w_ref, ctx_ref, aw_ref = refs

    x = x_ref[...]                                   # (BB, T, D) native dtype
    bb, _, d = x.shape
    w = w_ref[...]                                   # (1, D), same dtype as x

    # scores[b, t] = <x[b, t, :], w>  -- batched MXU contraction over D
    # (bias dropped: softmax is shift-invariant).
    wq = jnp.broadcast_to(w[None], (bb, 1, d))       # (BB, 1, D) cheap replicate
    scores = jnp.einsum("bqd,btd->bqt", wq, x,
                        preferred_element_type=jnp.float32)[:, 0, :]  # (BB, T)

    if has_mask:
        scores = jnp.where(m_ref[...] == 0.0, -jnp.inf, scores)

    # softmax over the time axis; (BB, T) keeps T on the 128-lane axis.
    s_max = jnp.max(scores, axis=-1, keepdims=True)            # (BB, 1)
    e = jnp.exp(scores - s_max)                                 # (BB, T)
    denom = jnp.sum(e, axis=-1, keepdims=True)                  # (BB, 1)
    # exact reciprocal keeps tight parity with the f32 reference
    # (approx=True is ~free on the EUP but adds ~1e-3 relative error).
    attn = e * pl.reciprocal(denom, approx=False)               # (BB, T) f32

    # lane-dense store of the attention weights.
    aw_ref[...] = attn.astype(aw_ref.dtype)

    # context[b, :] = sum_t attn[b, t] * x[b, t, :]  -- batched MXU matmul,
    # attention weights cast to x's dtype so bf16 inputs stay bf16 on the MXU.
    p = attn[:, None, :].astype(x.dtype)                        # (BB, 1, T)
    ctx = jnp.einsum("bqt,btd->bqd", p, x,
                     preferred_element_type=jnp.float32)        # (BB, 1, D)
    ctx_ref[...] = ctx[:, 0, :].astype(ctx_ref.dtype)


# --------------------------------------------------------------------------
# Tiling heuristics
# --------------------------------------------------------------------------
def _round_down8(v):
    return max(8, (v // 8) * 8)


def _choose_block_rows(batch, row_bytes):
    """Batch rows per grid step.

    Multiple of 8 (<= batch), x tile capped at ~2 MiB, then the grid is
    deepened toward >= 8 steps (>= 4 per v7x TensorCore) while the tile stays
    >= ~512 KiB (measured ~85% of HBM roofline at that size).  Always splits
    to >= 2 steps when batch allows so both v7x TensorCores get work.
    """
    if batch <= 8:
        return batch                       # one full-extent block (always legal)

    bb = _round_down8(min(batch, (2 * _MiB) // max(row_bytes, 1)))

    def steps(b):
        return -(-batch // b)

    while bb > 8 and steps(bb) < 8 and (
            (bb // 2) * row_bytes >= 512 * 1024 or steps(bb) < 2):
        bb = _round_down8(bb // 2)
    return bb


# --------------------------------------------------------------------------
# Wrapper
# --------------------------------------------------------------------------
def attention_layer(lstm_output, w, b=None, mask=None):
    """Pallas implementation of AttentionLayer.forward.

    Args:
      lstm_output: (B, T, D) array, D = 2 * hidden_dim (any float dtype;
                   streamed in its native dtype).
      w:           (D, 1) nn.Linear weight (transposed).
      b:           () nn.Linear bias.  Accepted for API parity but unused:
                   a constant shift cancels exactly in the softmax, so it has
                   no effect on the returned attention weights / context.
      mask:        optional (T,) or (B', T') mask; 0 marks masked positions.
    Returns:
      (context (B, D), attention_weights (B, T, 1))
    """
    del b  # softmax-invariant; see docstring.

    B, T, D = lstm_output.shape
    x = lstm_output                                  # no copy, no pad, no cast
    dtype = x.dtype
    itemsize = jnp.dtype(dtype).itemsize

    w_row = jnp.asarray(w).reshape(1, D).astype(dtype)

    # ---- mask normalization (mirrors the PyTorch branchy logic) -----------
    has_mask = mask is not None
    if has_mask:
        m = jnp.asarray(mask)
        if m.ndim == 1:
            m = m[None, :]                           # unsqueeze(0)
        if m.shape[1] != T:
            if m.shape[1] > T:
                m = m[:, :T]                         # truncate
            else:
                m = jnp.pad(m, ((0, 0), (0, T - m.shape[1])),
                            constant_values=0)       # pad with 0 (= masked)
        m = jnp.broadcast_to(m.astype(jnp.float32), (B, T))

    # ---- tiling ------------------------------------------------------------
    row_bytes = T * D * itemsize
    BB = _choose_block_rows(B, row_bytes)
    grid = (pl.cdiv(B, BB),)

    # ---- explicit VMEM accounting (v7x: 64 MiB physical, 32 MiB default) ---
    tile_bytes = BB * row_bytes
    vmem_est = (2 * tile_bytes                          # double-buffered x tile
                + BB * D * itemsize                     # broadcast weight row
                + 4 * BB * T * 4                        # scores / exp / attn (f32)
                + 2 * BB * D * 4                        # context accumulator (f32)
                + 2 * BB * (D + T) * itemsize           # double-buffered outputs
                + (2 * BB * T * 4 if has_mask else 0)   # mask tile
                + _MiB)                                 # slack
    vmem_limit = int(min(max(2 * vmem_est, 32 * _MiB), 64 * _MiB))

    in_specs = [
        pl.BlockSpec((BB, T, D), lambda i: (i, 0, 0)),   # x slab, full T & D
        pl.BlockSpec((1, D), lambda i: (0, 0)),          # weight row
    ]
    args = [x, w_row]
    if has_mask:
        in_specs.append(pl.BlockSpec((BB, T), lambda i: (i, 0)))
        args.append(m)

    cost = pl.CostEstimate(
        flops=4 * B * T * D + 8 * B * T,
        transcendentals=B * T,
        bytes_accessed=(x.size * itemsize + w_row.size * itemsize
                        + (B * T * 4 if has_mask else 0)
                        + (B * D + B * T) * itemsize))

    kernel = functools.partial(_attention_kernel, has_mask=has_mask)

    ctx, aw = pl.pallas_call(
        kernel,
        out_shape=(
            jax.ShapeDtypeStruct((B, D), dtype),     # context
            jax.ShapeDtypeStruct((B, T), dtype),     # attention weights (lane-dense)
        ),
        grid_spec=pltpu.PrefetchScalarGridSpec(
            num_scalar_prefetch=0,
            grid=grid,
            in_specs=in_specs,
            out_specs=[
                pl.BlockSpec((BB, D), lambda i: (i, 0)),
                pl.BlockSpec((BB, T), lambda i: (i, 0)),
            ],
        ),
        compiler_params=pltpu.CompilerParams(
            dimension_semantics=("parallel",),
            vmem_limit_bytes=vmem_limit),
        cost_estimate=cost,
    )(*args)

    return ctx, aw[:, :, None]      # (B, T, 1): PyTorch output shape (free view)


# --------------------------------------------------------------------------
# Reference + self-test
# --------------------------------------------------------------------------
def _reference(lstm_output, w, b, mask=None):
    scores = jnp.einsum("btd,do->bto", lstm_output, w) + b
    if mask is not None:
        scores = jnp.where(mask[:, :, None] == 0, -jnp.inf, scores)
    attn = jax.nn.softmax(scores, axis=1)
    context = jnp.sum(attn * lstm_output, axis=1)
    return context, attn


def _run_case(key, B, T, hidden, mask):
    D = 2 * hidden
    k1, k2, k3 = jax.random.split(key, 3)
    lstm_output = jax.random.normal(k1, (B, T, D), dtype=jnp.float32)
    bound = 1.0 / (D ** 0.5)
    w = jax.random.uniform(k2, (D, 1), minval=-bound, maxval=bound,
                           dtype=jnp.float32)
    b = jax.random.uniform(k3, (), minval=-bound, maxval=bound,
                           dtype=jnp.float32)

    ctx, attn = attention_layer(lstm_output, w, b, mask)
    jax.block_until_ready((ctx, attn))
    ctx_ref, attn_ref = _reference(lstm_output, w, b, mask)
    assert jnp.allclose(ctx, ctx_ref, atol=1e-5, rtol=1e-5), "context mismatch"
    assert jnp.allclose(attn, attn_ref, atol=1e-5, rtol=1e-5), "attn mismatch"


if __name__ == "__main__":
    key = jax.random.PRNGKey(0)
    k_a, k_b, k_c = jax.random.split(key, 3)

    # Case 1: small shape from the module spec, with a partially masked row.
    B1, T1, H1 = 2, 8, 32
    mask1 = jnp.ones((B1, T1), dtype=jnp.float32).at[1, T1 - 2:].set(0.0)
    _run_case(k_a, B1, T1, H1, mask1)

    # Case 2: mask=None (specialized no-mask kernel, nothing extra streamed).
    _run_case(k_b, B1, T1, H1, None)

    # Case 3: odd shapes -- B not a multiple of the block rows (partial last
    # grid block), T not a multiple of 8, D not a multiple of 128.
    B3, T3, H3 = 19, 12, 24
    mask3 = (jnp.ones((B3, T3), dtype=jnp.float32)
             .at[0, T3 - 3:].set(0.0)
             .at[5, :2].set(0.0))
    _run_case(k_c, B3, T3, H3, mask3)

    print("KERNEL_OK")
</pallas_src>

<mosaic_0001>
module attributes {stable_mosaic.version = 11 : i64} {
  func.func @_attention_kernel(%arg0: i32, %arg1: memref<2x8x64xf32, #tpu.memory_space<vmem>>, %arg2: memref<1x64xf32, #tpu.memory_space<vmem>>, %arg3: memref<2x8xf32, #tpu.memory_space<vmem>>, %arg4: memref<2x64xf32, #tpu.memory_space<vmem>>, %arg5: memref<2x8xf32, #tpu.memory_space<vmem>>) attributes {dimension_semantics = [#tpu.dimension_semantics<parallel>], iteration_bounds = array<i64: 1>, scalar_prefetch = 0 : i64, scratch_operands = 0 : i64, tpu.core_type = #tpu.core_type<tc>, window_params = [{transform_indices = @transform_0, window_bounds = array<i64: 2, 8, 64>}, {pipeline_mode = #tpu.pipeline_mode<synchronous>, transform_indices = @transform_1, window_bounds = array<i64: 1, 64>}, {transform_indices = @transform_2, window_bounds = array<i64: 2, 8>}, {transform_indices = @transform_3, window_bounds = array<i64: 2, 64>}, {transform_indices = @transform_4, window_bounds = array<i64: 2, 8>}]} {
    %c0 = arith.constant 0 : index
    %c0_0 = arith.constant 0 : index
    %c0_1 = arith.constant 0 : index
    %0 = vector.load %arg1[%c0, %c0_0, %c0_1] : memref<2x8x64xf32, #tpu.memory_space<vmem>>, vector<2x8x64xf32>
    %c0_2 = arith.constant 0 : index
    %c0_3 = arith.constant 0 : index
    %1 = vector.load %arg2[%c0_2, %c0_3] : memref<1x64xf32, #tpu.memory_space<vmem>>, vector<1x64xf32>
    %2 = vector.shape_cast %1 : vector<1x64xf32> to vector<1x1x64xf32>
    %3 = vector.shape_cast %2 : vector<1x1x64xf32> to vector<1x1x64xf32>
    %4 = vector.broadcast %3 : vector<1x1x64xf32> to vector<2x1x64xf32>
    "tpu.trace_start"() <{level = 10 : i32, message = "bqd,btd->bqt"}> : () -> ()
    %cst = arith.constant dense<0.000000e+00> : vector<2x1x8xf32>
    %5 = tpu.matmul %4, %0, %cst {dimension_numbers = #tpu.dot_dimension_numbers<[2], [2], [1], [1], [0, 0, 0, 1, 1, 1], [0], [0]>} : vector<2x1x64xf32>, vector<2x8x64xf32>, vector<2x1x8xf32> -> vector<2x1x8xf32>
    "tpu.trace_stop"() : () -> ()
    %6 = vector.shape_cast %5 : vector<2x1x8xf32> to vector<2x8xf32>
    %c0_4 = arith.constant 0 : index
    %c0_5 = arith.constant 0 : index
    %7 = vector.load %arg3[%c0_4, %c0_5] : memref<2x8xf32, #tpu.memory_space<vmem>>, vector<2x8xf32>
    %cst_6 = arith.constant 0.000000e+00 : f32
    %8 = vector.broadcast %cst_6 : f32 to vector<2x8xf32>
    %9 = arith.cmpf oeq, %7, %8 : vector<2x8xf32>
    %cst_7 = arith.constant 0xFF800000 : f32
    %10 = vector.broadcast %cst_7 : f32 to vector<2x8xf32>
    %11 = arith.select %9, %10, %6 : vector<2x8xi1>, vector<2x8xf32>
    %cst_8 = arith.constant dense<0xFF800000> : vector<2xf32>
    %12 = vector.multi_reduction <maximumf>, %11, %cst_8 [1] : vector<2x8xf32> to vector<2xf32>
    %13 = vector.shape_cast %12 : vector<2xf32> to vector<2x1xf32>
    %14 = vector.broadcast %13 : vector<2x1xf32> to vector<2x8xf32>
    %15 = arith.subf %11, %14 : vector<2x8xf32>
    %16 = math.exp %15 : vector<2x8xf32>
    %cst_9 = arith.constant dense<0.000000e+00> : vector<2xf32>
    %17 = vector.multi_reduction <add>, %16, %cst_9 [1] : vector<2x8xf32> to vector<2xf32>
    %18 = vector.shape_cast %17 : vector<2xf32> to vector<2x1xf32>
    %19 = tpu.reciprocal %18 : vector<2x1xf32> -> vector<2x1xf32>
    %20 = vector.broadcast %19 : vector<2x1xf32> to vector<2x8xf32>
    %21 = arith.mulf %16, %20 : vector<2x8xf32>
    %c0_10 = arith.constant 0 : index
    %c0_11 = arith.constant 0 : index
    %22 = vector.load %arg5[%c0_10, %c0_11] : memref<2x8xf32, #tpu.memory_space<vmem>>, vector<2x8xf32>
    tpu.vector_store %arg5[%c0_10, %c0_11], %21 {strides = array<i32>} : memref<2x8xf32, #tpu.memory_space<vmem>>, vector<2x8xf32>,
    %23 = vector.shape_cast %21 : vector<2x8xf32> to vector<2x1x8xf32>
    "tpu.trace_start"() <{level = 10 : i32, message = "bqt,btd->bqd"}> : () -> ()
    %cst_12 = arith.constant dense<0.000000e+00> : vector<2x1x64xf32>
    %24 = tpu.matmul %23, %0, %cst_12 {dimension_numbers = #tpu.dot_dimension_numbers<[2], [1], [1], [2], [0, 0, 0, 1, 1, 2], [0], [0]>} : vector<2x1x8xf32>, vector<2x8x64xf32>, vector<2x1x64xf32> -> vector<2x1x64xf32>
    "tpu.trace_stop"() : () -> ()
    %25 = vector.shape_cast %24 : vector<2x1x64xf32> to vector<2x64xf32>
    %c0_13 = arith.constant 0 : index
    %c0_14 = arith.constant 0 : index
    %26 = vector.load %arg4[%c0_13, %c0_14] : memref<2x64xf32, #tpu.memory_space<vmem>>, vector<2x64xf32>
    tpu.vector_store %arg4[%c0_13, %c0_14], %25 {strides = array<i32>} : memref<2x64xf32, #tpu.memory_space<vmem>>, vector<2x64xf32>,
    return
  }
  func.func @transform_0(%arg0: i32) -> (i32, i32, i32) {
    %c0_i32 = arith.constant 0 : i32
    %c0_i32_0 = arith.constant 0 : i32
    %c0_i32_1 = arith.constant 0 : i32
    return %arg0, %c0_i32, %c0_i32_0 : i32, i32, i32
  }
  func.func @transform_1(%arg0: i32) -> (i32, i32) {
    %c0_i32 = arith.constant 0 : i32
    %c0_i32_0 = arith.constant 0 : i32
    %c0_i32_1 = arith.constant 0 : i32
    return %c0_i32, %c0_i32_0 : i32, i32
  }
  func.func @transform_2(%arg0: i32) -> (i32, i32) {
    %c0_i32 = arith.constant 0 : i32
    %c0_i32_0 = arith.constant 0 : i32
    return %arg0, %c0_i32 : i32, i32
  }
  func.func @transform_3(%arg0: i32) -> (i32, i32) {
    %c0_i32 = arith.constant 0 : i32
    %c0_i32_0 = arith.constant 0 : i32
    return %arg0, %c0_i32 : i32, i32
  }
  func.func @transform_4(%arg0: i32) -> (i32, i32) {
    %c0_i32 = arith.constant 0 : i32
    %c0_i32_0 = arith.constant 0 : i32
    return %arg0, %c0_i32 : i32, i32
  }
}

</mosaic_0001>

<llo_original>
// kernel: tpu_custom_call.1
$region0: #{tpu_custom_call.1}
  #allocation0 [shape = 'u32[]', space=smem, size = 0x4, offset = 0x4, fixed_abs, tag = 'smem constant byte address 0x4 - core index']
  #allocation1 [shape = 'u32[72,128]{1,0:T(1,128)}', space=vmem, size = 0x9000, scoped, tag = 'internal scratch']
  %s0 = inlined_call_operand.hbm [shape: f32[2,8,64], index: 0, kind: input, shape index: {}]
  %s1 = inlined_call_operand.hbm [shape: f32[1,64], index: 1, kind: input, shape index: {}]
  %s2 = inlined_call_operand.hbm [shape: f32[2,8], index: 2, kind: input, shape index: {}]
  %s3 = inlined_call_operand.hbm [shape: f32[2,64], index: 3, kind: output, shape index: {0}]
  %s4 = inlined_call_operand.hbm [shape: f32[2,8], index: 4, kind: output, shape index: {1}]
  %5 = xla_tuple %s3, %s4
  %s6 = sld [smem:[#allocation0]]
  $region42: #{tpu_custom_call.1} parent=0
    _
  %s8 = ssub.s32 1, %s6
  %s9 = scalar_select 0, %s8, %s6
  $region1: #{tpu_custom_call.1} parent=0
    #allocation2 [shape = 'u8[8192]{0}', space=vmem, size = 0x2000, scoped, tag = 'input window, operand 0, single buffered']
    #allocation3 [shape = 's32[1]{0}', space=sflag, size = 0x4, scoped, tag = 'scoped memory for tpu_custom_call.1']
    #allocation4 [shape = 's32[1]{0}', space=sflag, size = 0x4, scoped, tag = 'scoped memory for tpu_custom_call.1']
    #allocation5 [shape = 'u8[512]{0}', space=vmem, size = 0x400, scoped, tag = 'input window, operand 1, single buffered']
    #allocation6 [shape = 's32[1]{0}', space=sflag, size = 0x4, scoped, tag = 'scoped memory for tpu_custom_call.1']
    #allocation7 [shape = 'u8[1024]{0}', space=vmem, size = 0x400, scoped, tag = 'input window, operand 2, single buffered']
    #allocation8 [shape = 'u8[1024]{0}', space=vmem, size = 0x400, scoped, tag = 'output window, operand 0, single buffered']
    #allocation9 [shape = 'u8[1024]{0}', space=vmem, size = 0x400, scoped, tag = 'output window, operand 1, single buffered']
    #allocation10 [shape = 's32[1]{0}', space=sflag, size = 0x4, scoped, tag = 'scoped memory for tpu_custom_call.1']
    %10 = vsyncpa [#allocation3], 0
    %11 = vsyncpa [#allocation6], 0
    %12 = vsyncpa [#allocation4], 0
    %13 = vsyncpa [#allocation10], 0
    // Predicated region
    $region2: #{tpu_custom_call.1} parent=1 // pred_check
      _
    $region3: #{tpu_custom_call.1} parent=1 // pred_check_branch
      %15 = sbr.rel (0) target = $region5
    $region4: #{tpu_custom_call.1} parent=1 // pred_region
      %17 = vsyncadd [#allocation3], 0
      %s18 = sshll.u32 %s0, 4
      %s19 = int_to_ptr.hbm [resolvable:$true] %s18
      %s20 = sshll.u32 [#allocation2], 4
      %s21 = int_to_ptr.vmem [resolvable:$true] %s20
      %26 = dma.hbm_to_vmem [thread:$0]  %s19, 256, %s21, [#allocation3], 128, 128, 8
    $region5: #{tpu_custom_call.1} parent=1 // pred_fallthru
      _
    // Predicated region
    $region6: #{tpu_custom_call.1} parent=1 // pred_check
      _
    $region7: #{tpu_custom_call.1} parent=1 // pred_check_branch
      %28 = sbr.rel (0) target = $region9
    $region8: #{tpu_custom_call.1} parent=1 // pred_region
      %30 = vsyncadd [#allocation6], 0
      %s32 = sshll.u32 %s1, 4
      %s33 = int_to_ptr.hbm [resolvable:$true] %s32
      %s34 = sshll.u32 [#allocation5], 4
      %s35 = int_to_ptr.vmem [resolvable:$true] %s34
      %37 = dma.hbm_to_vmem [thread:$0]  %s33, 16, %s35, [#allocation6]
    $region9: #{tpu_custom_call.1} parent=1 // pred_fallthru
      _
    // Predicated region
    $region10: #{tpu_custom_call.1} parent=1 // pred_check
      _
    $region11: #{tpu_custom_call.1} parent=1 // pred_check_branch
      %39 = sbr.rel (0) target = $region13
    $region12: #{tpu_custom_call.1} parent=1 // pred_region
      %41 = vsyncadd [#allocation6], 0
      %s43 = sshll.u32 %s2, 4
      %s44 = int_to_ptr.hbm [resolvable:$true] %s43
      %s45 = sshll.u32 [#allocation7], 4
      %s46 = int_to_ptr.vmem [resolvable:$true] %s45
      %48 = dma.hbm_to_vmem [thread:$0]  %s44, 32, %s46, [#allocation6]
    $region13: #{tpu_custom_call.1} parent=1 // pred_fallthru
      _
    // Predicated region
    $region14: #{tpu_custom_call.1} parent=1 // pred_check
      _
    $region15: #{tpu_custom_call.1} parent=1 // pred_check_branch
      %50 = sbr.rel (0) target = $region17
    $region16: #{tpu_custom_call.1} parent=1 // pred_region
      %52 = dma.done [#allocation3], 256
    $region17: #{tpu_custom_call.1} parent=1 // pred_fallthru
      _
    // Predicated region
    $region18: #{tpu_custom_call.1} parent=1 // pred_check
      _
    $region19: #{tpu_custom_call.1} parent=1 // pred_check_branch
      %54 = sbr.rel (0) target = $region21
    $region20: #{tpu_custom_call.1} parent=1 // pred_region
      %56 = dma.done [#allocation6], 16
    $region21: #{tpu_custom_call.1} parent=1 // pred_fallthru
      _
    // Predicated region
    $region22: #{tpu_custom_call.1} parent=1 // pred_check
      _
    $region23: #{tpu_custom_call.1} parent=1 // pred_check_branch
      %58 = sbr.rel (0) target = $region25
    $region24: #{tpu_custom_call.1} parent=1 // pred_region
      %60 = dma.done [#allocation6], 32
    $region25: #{tpu_custom_call.1} parent=1 // pred_fallthru
      _
    %v61 = vld [vmem:[#allocation2] sm:$0xff]
    %v62 = vld [vmem:[#allocation2 + $0x8] sm:$0xff]
    %v63 = vld [vmem:[#allocation5] sm:$0x1]
    %vm64 = vcmask 523264
    %v66 = vsel %vm64, %v63, 0
    %v69 = vsel %vm64, %v61, 0
    %71 = vmatpush.xpose.msra.mxu0 0.0
    %72 = vmatpush.xpose.msra.mxu0 0.0
    %73 = vmatpush.xpose.msra.mxu0 0.0
    %74 = vmatpush.xpose.msra.mxu0 0.0
    %75 = vmatpush.xpose.msra.mxu0 0.0
    %76 = vmatpush.xpose.msra.mxu0 0.0
    %77 = vmatpush.xpose.msra.mxu0 0.0
    %78 = vmatpush.xpose.msra.mxu0 0.0
    %79 = vmatpush.xpose.msra.mxu0 0.0
    %80 = vmatpush.xpose.msra.mxu0 0.0
    %81 = vmatpush.xpose.msra.mxu0 0.0
    %82 = vmatpush.xpose.msra.mxu0 0.0
    %83 = vmatpush.xpose.msra.mxu0 0.0
    %84 = vmatpush.xpose.msra.mxu0 0.0
    %85 = vmatpush.xpose.msra.mxu0 0.0
    %86 = vmatpush.xpose.msra.mxu0 %v69
    %87 = vmatmul.f32.gmra.mxu0 %v66
    %v88 = vpop.f32.mrf.mxu0
    %v89 = vadd.f32 0.0, %v88
    %90 = vdwg.mxu0
    %v92 = vsel %vm64, %v62, 0
    %94 = vmatpush.xpose.msra.mxu0 0.0
    %95 = vmatpush.xpose.msra.mxu0 0.0
    %96 = vmatpush.xpose.msra.mxu0 0.0
    %97 = vmatpush.xpose.msra.mxu0 0.0
    %98 = vmatpush.xpose.msra.mxu0 0.0
    %99 = vmatpush.xpose.msra.mxu0 0.0
    %100 = vmatpush.xpose.msra.mxu0 0.0
    %101 = vmatpush.xpose.msra.mxu0 0.0
    %102 = vmatpush.xpose.msra.mxu0 0.0
    %103 = vmatpush.xpose.msra.mxu0 0.0
    %104 = vmatpush.xpose.msra.mxu0 0.0
    %105 = vmatpush.xpose.msra.mxu0 0.0
    %106 = vmatpush.xpose.msra.mxu0 0.0
    %107 = vmatpush.xpose.msra.mxu0 0.0
    %108 = vmatpush.xpose.msra.mxu0 0.0
    %109 = vmatpush.xpose.msra.mxu0 %v92
    %110 = vmatmul.f32.gmra.mxu0 %v66
    %v111 = vpop.f32.mrf.mxu0
    %v112 = vadd.f32 0.0, %v111
    %113 = vdwg.mxu0
    %v114 = vld [vmem:[#allocation7] sm:$0x3]
    %vm115 = vcmp.eq.f32.partialorder %v114, 0.0
    %v118 = vrot.slane %v112, 7
    %vm119 = vcmask 1041409
    %v120 = vsel %vm119, %v118, %v89
    %v122 = vsel %vm115, -inf, %v120
    %vm123 = vcmask 58368
    %v124 = vsel %vm123, %v122, -inf
    %125 = vmax.xlane.f32.xlu0 %v124
    %v126 = vpop.xlane.xlu0 %125
    %v127 = vsub.f32 %v122, %v126
    %v128 = vmul.f32 %v127, 1.442695
    %v129 = vpow.pop %v128
    %v130 = vsel %vm123, %v129, 0.0
    %131 = vadd.xlane.f32.xlu0 %v130
    %v132 = vpop.xlane.xlu0 %131
    %v133 = vrcp.pop %v132
    %v134 = vmul.f32 %v132, %v133
    %v135 = vsub.f32 1.0, %v134
    %v136 = vmul.f32 %v133, %v135
    %v137 = vadd.f32 %v133, %v136
    %vm138 = vweird.f32 %v132
    %vm139 = vweird.f32 %v133
    %vm140 = vmor %vm138, %vm139
    %v141 = vsel %vm140, %v133, %v137
    %v142 = vand.u32 2147483647, %v132
    %vm143 = vcmp.eq.f32.partialorder %v142, 8.507059e+37
    %v144 = vand.u32 %v132, 2147483648
    %v145 = vor.u32 1.1754944e-38, %v144
    %v146 = vsel %vm143, %v145, %v141
    %v147 = vmul.f32 %v129, %v146
    %148 = vst.msk [vmem:[#allocation9] sm:$0x3] %vm123, %v147
    %v150 = vrot.slane %v147, 1
    %vm151 = vcmask 64512
    %v152 = vsel %vm151, %v147, 0
    %154 = vmatpush.msra.mxu0 0.0
    %155 = vmatpush.msra.mxu0 0.0
    %156 = vmatpush.msra.mxu0 0.0
    %157 = vmatpush.msra.mxu0 0.0
    %158 = vmatpush.msra.mxu0 0.0
    %159 = vmatpush.msra.mxu0 0.0
    %160 = vmatpush.msra.mxu0 0.0
    %161 = vmatpush.msra.mxu0 0.0
    %162 = vmatpush.msra.mxu0 0.0
    %163 = vmatpush.msra.mxu0 0.0
    %164 = vmatpush.msra.mxu0 0.0
    %165 = vmatpush.msra.mxu0 0.0
    %166 = vmatpush.msra.mxu0 0.0
    %167 = vmatpush.msra.mxu0 0.0
    %168 = vmatpush.msra.mxu0 0.0
    %169 = vmatpush.msra.mxu0 %v61
    %170 = vmatmul.f32.gmra.mxu0 %v152
    %v171 = vpop.f32.mrf.mxu0
    %v172 = vadd.f32 0.0, %v171
    %173 = vdwg.mxu0
    %v174 = vsel %vm151, %v150, 0
    %176 = vmatpush.msra.mxu0 0.0
    %177 = vmatpush.msra.mxu0 0.0
    %178 = vmatpush.msra.mxu0 0.0
    %179 = vmatpush.msra.mxu0 0.0
    %180 = vmatpush.msra.mxu0 0.0
    %181 = vmatpush.msra.mxu0 0.0
    %182 = vmatpush.msra.mxu0 0.0
    %183 = vmatpush.msra.mxu0 0.0
    %184 = vmatpush.msra.mxu0 0.0
    %185 = vmatpush.msra.mxu0 0.0
    %186 = vmatpush.msra.mxu0 0.0
    %187 = vmatpush.msra.mxu0 0.0
    %188 = vmatpush.msra.mxu0 0.0
    %189 = vmatpush.msra.mxu0 0.0
    %190 = vmatpush.msra.mxu0 0.0
    %191 = vmatpush.msra.mxu0 %v62
    %192 = vmatmul.f32.gmra.mxu0 %v174
    %v193 = vpop.f32.mrf.mxu0
    %v194 = vadd.f32 0.0, %v193
    %195 = vdwg.mxu0
    %v198 = vrot.slane %v194, 7
    %v199 = vsel %vm119, %v198, %v172
    %vm201 = vcmask 517120
    %202 = vst.msk [vmem:[#allocation8] sm:$0x3] %vm201, %v199
    // Predicated region
    $region26: #{tpu_custom_call.1} parent=1 // pred_check
      _
    $region27: #{tpu_custom_call.1} parent=1 // pred_check_branch
      %204 = sbr.rel (0) target = $region29
    $region28: #{tpu_custom_call.1} parent=1 // pred_region
      %206 = vsyncadd [#allocation4], 0
      %s208 = sshll.u32 [#allocation8], 4
      %s209 = int_to_ptr.vmem [resolvable:$true] %s208
      %s210 = sshll.u32 %s3, 4
      %s211 = int_to_ptr.hbm [resolvable:$true] %s210
      %213 = dma.vmem_to_hbm [thread:$0]  %s209, 32, %s211, [#allocation4]
    $region29: #{tpu_custom_call.1} parent=1 // pred_fallthru
      _
    // Predicated region
    $region30: #{tpu_custom_call.1} parent=1 // pred_check
      _
    $region31: #{tpu_custom_call.1} parent=1 // pred_check_branch
      %215 = sbr.rel (0) target = $region33
    $region32: #{tpu_custom_call.1} parent=1 // pred_region
      %217 = vsyncadd [#allocation10], 0
      %s219 = sshll.u32 [#allocation9], 4
      %s220 = int_to_ptr.vmem [resolvable:$true] %s219
      %s221 = sshll.u32 %s4, 4
      %s222 = int_to_ptr.hbm [resolvable:$true] %s221
      %224 = dma.vmem_to_hbm [thread:$0]  %s220, 32, %s222, [#allocation10]
    $region33: #{tpu_custom_call.1} parent=1 // pred_fallthru
      _
    // Predicated region
    $region34: #{tpu_custom_call.1} parent=1 // pred_check
      _
    $region35: #{tpu_custom_call.1} parent=1 // pred_check_branch
      %226 = sbr.rel (0) target = $region37
    $region36: #{tpu_custom_call.1} parent=1 // pred_region
      %228 = dma.done [#allocation4], 32
    $region37: #{tpu_custom_call.1} parent=1 // pred_fallthru
      _
    // Predicated region
    $region38: #{tpu_custom_call.1} parent=1 // pred_check
      _
    $region39: #{tpu_custom_call.1} parent=1 // pred_check_branch
      %230 = sbr.rel (0) target = $region41
    $region40: #{tpu_custom_call.1} parent=1 // pred_region
      %232 = dma.done [#allocation10], 32
    $region41: #{tpu_custom_call.1} parent=1 // pred_fallthru
      _
    %233 = vsyncpa [#allocation3], 1
    %234 = vsyncpa [#allocation6], 1
    %235 = vsyncpa [#allocation4], 1
    %236 = vsyncpa [#allocation10], 1

</llo_original>
